<compile_context>
chip_gen: v6e
topology: v6e:2x2x1
jax: 0.10.0
libtpu: 0.0.40
codegen_flags: <defaults>
</compile_context>

<pallas_src>
import functools

import jax
import jax.numpy as jnp
from jax.experimental import pallas as pl
from jax.experimental.pallas import tpu as pltpu


HIDDEN_LAYERS = [128, 128, 128, 128, 128]
LANE = 128
SUBLANE = 8


def _round_up(x, m):
    return ((x + m - 1) // m) * m


def _const_spec(shape):
    """Grid-invariant block (weights/biases): fetched once, resident in VMEM.

    Uses single buffering (pl.Buffered(1)) when supported -- the block index
    never changes, so a second pipeline buffer is pure VMEM waste.
    """
    idx = lambda i: (0, 0)
    try:
        return pl.BlockSpec(shape, idx, pipeline_mode=pl.Buffered(1))
    except (AttributeError, TypeError):
        return pl.BlockSpec(shape, idx)


def dqn_kernel(x_ref, *refs, compute_dtype):
    """Fused MLP forward for one batch tile.

    refs = (w0, b0, w1, b1, ..., wL, bL, out_ref)
    x arrives in f32 and is cast to `compute_dtype` here (no wrapper-side cast
    pass over HBM).  Matmuls accumulate in f32 on the MXU; bias add + ReLU run
    in f32 on the VPU (required on v5e); activations are cast back to the
    compute dtype only to feed the next MXU op.
    """
    out_ref = refs[-1]
    param_refs = refs[:-1]
    n_layers = len(param_refs) // 2

    h = x_ref[...].astype(compute_dtype)
    for li in range(n_layers):
        w = param_refs[2 * li][...]
        b = param_refs[2 * li + 1][...]                      # (1, out), f32
        acc = jnp.dot(h, w, preferred_element_type=jnp.float32) + b
        if li != n_layers - 1:
            acc = jnp.maximum(acc, 0.0)                      # ReLU, f32
            h = acc.astype(w.dtype)                          # back to MXU dtype
        else:
            h = acc                                          # final layer: f32
    out_ref[...] = h.astype(out_ref.dtype)


def _pick_batch_tile(batch, requested):
    """Large MXU-friendly tile, but always >=2 grid steps when the batch allows
    it so the parallel axis spans both TensorCores on v7x."""
    tile = max(SUBLANE, _round_up(requested, SUBLANE))
    if batch <= 2 * tile:
        if batch > SUBLANE:
            tile = _round_up(pl.cdiv(batch, 2), SUBLANE)     # 2 (ragged) tiles
        else:
            tile = SUBLANE                                   # single tiny tile
    return tile


def _estimate_vmem_bytes(batch_tile, dims, compute_dtype, out_dtype):
    """Rough upper bound of the per-step VMEM working set (lane-padded)."""
    cbytes = jnp.dtype(compute_dtype).itemsize
    obytes = jnp.dtype(out_dtype).itemsize
    lanes = lambda n: _round_up(max(n, 1), LANE)
    est = 2 * batch_tile * lanes(dims[0]) * 4                # x double-buffer (f32)
    est += 2 * batch_tile * lanes(dims[-1]) * obytes         # out double-buffer
    for i in range(len(dims) - 1):
        est += _round_up(dims[i], SUBLANE) * lanes(dims[i + 1]) * cbytes  # W
        est += SUBLANE * lanes(dims[i + 1]) * 4                            # b
    est += 3 * batch_tile * lanes(max(dims[1:-1])) * 4       # live activations
    return est


def dqn_forward(x, params, *, batch_tile=1024, compute_dtype=jnp.bfloat16,
                out_dtype=jnp.float32):
    """params: list of (W_t [in, out], b [1, out]) in float32 (PyTorch layout^T).

    x is consumed as-is (f32) -- no wrapper cast/pad; output is exactly
    (B, action_dim) -- no wrapper slice.  Set out_dtype=bf16 to halve the
    output writeback bytes if downstream tolerates it.
    """
    B, state_dim = x.shape
    action_dim = params[-1][0].shape[1]
    dims = [state_dim] + [w.shape[1] for w, _ in params]

    # Params are tiny (<0.3 MB); cast weights to the MXU dtype, biases stay f32.
    kparams = [(w.astype(compute_dtype), b.astype(jnp.float32)) for w, b in params]

    batch_tile = _pick_batch_tile(B, batch_tile)
    grid = (pl.cdiv(B, batch_tile),)                         # ragged last tile OK:
    # OOB rows hold garbage but each output row depends only on its own input
    # row and OOB output rows are masked on writeback.

    in_specs = [pl.BlockSpec((batch_tile, state_dim), lambda i: (i, 0))]
    flat_params = []
    for w, b in kparams:
        in_specs.append(_const_spec(w.shape))
        in_specs.append(_const_spec(b.shape))
        flat_params.extend([w, b])

    out_specs = pl.BlockSpec((batch_tile, action_dim), lambda i: (i, 0))

    # Only override the scoped-VMEM default when a very large tile needs it
    # (relevant on v5e's 16 MiB default when batch_tile is pushed past ~4K).
    est = _estimate_vmem_bytes(batch_tile, dims, compute_dtype, out_dtype)
    vmem_limit = None
    if est > 12 * (1 << 20):
        vmem_limit = int(min(128 << 20, _round_up(int(est * 1.5), 1 << 20)))

    out = pl.pallas_call(
        functools.partial(dqn_kernel, compute_dtype=compute_dtype),
        out_shape=jax.ShapeDtypeStruct((B, action_dim), out_dtype),
        grid_spec=pltpu.PrefetchScalarGridSpec(
            num_scalar_prefetch=0,
            grid=grid,
            in_specs=in_specs,
            out_specs=out_specs,
        ),
        compiler_params=pltpu.CompilerParams(
            # batch-tile axis is independent -> shards across both TCs on v7x
            dimension_semantics=("parallel",),
            vmem_limit_bytes=vmem_limit,
        ),
    )(x, *flat_params)

    return out


def init_dqn_params(key, state_dim, action_dim, hidden_layers=HIDDEN_LAYERS):
    """Deterministic init mimicking PyTorch nn.Linear default U(-1/sqrt(fan_in), +)."""
    dims = [state_dim] + list(hidden_layers) + [action_dim]
    params = []
    for i in range(len(dims) - 1):
        fan_in, fan_out = dims[i], dims[i + 1]
        key, kw, kb = jax.random.split(key, 3)
        bound = 1.0 / jnp.sqrt(jnp.float32(fan_in))
        w_t = jax.random.uniform(kw, (fan_in, fan_out), jnp.float32, -bound, bound)
        b = jax.random.uniform(kb, (1, fan_out), jnp.float32, -bound, bound)
        params.append((w_t, b))
    return params


def dqn_reference(x, params, compute_dtype=jnp.bfloat16, out_dtype=jnp.float32):
    """Pure-JAX reference applying the same bf16 rounding points as the kernel."""
    h = x.astype(compute_dtype).astype(jnp.float32)
    for i, (w, b) in enumerate(params):
        w32 = w.astype(compute_dtype).astype(jnp.float32)
        h = h @ w32 + b.astype(jnp.float32)
        if i != len(params) - 1:
            h = jnp.maximum(h, 0.0)
            h = h.astype(compute_dtype).astype(jnp.float32)
    return h.astype(out_dtype)


if __name__ == "__main__":
    key = jax.random.PRNGKey(0)
    state_dim, action_dim = 16, 4
    k_p, k_x1, k_x2 = jax.random.split(key, 3)
    params = init_dqn_params(k_p, state_dim, action_dim)

    # Tiny online-inference batch: single (ragged) 8-row tile, no pad/slice ops.
    x_small = jax.random.normal(k_x1, (2, state_dim), jnp.float32)
    out_small = jax.block_until_ready(dqn_forward(x_small, params))
    ref_small = dqn_reference(x_small, params)
    assert out_small.shape == (2, action_dim)
    assert jnp.allclose(out_small, ref_small, atol=2e-3, rtol=2e-3), "small-batch mismatch"

    # Medium batch: split into 2 tiles (both TCs on v7x), last tile ragged
    # (rows 200..207 of the block are out-of-bounds and masked on writeback).
    x_mid = jax.random.normal(k_x2, (200, state_dim), jnp.float32)
    out_mid = jax.block_until_ready(dqn_forward(x_mid, params))
    ref_mid = dqn_reference(x_mid, params)
    assert out_mid.shape == (200, action_dim)
    assert jnp.allclose(out_mid, ref_mid, atol=2e-3, rtol=2e-3), "multi-tile mismatch"

    print("KERNEL_OK")
</pallas_src>

<mosaic_0001>
module attributes {stable_mosaic.version = 11 : i64} {
  func.func @dqn_kernel(%arg0: i32, %arg1: memref<8x16xf32, #tpu.memory_space<vmem>>, %arg2: memref<16x128xbf16, #tpu.memory_space<vmem>>, %arg3: memref<1x128xf32, #tpu.memory_space<vmem>>, %arg4: memref<128x128xbf16, #tpu.memory_space<vmem>>, %arg5: memref<1x128xf32, #tpu.memory_space<vmem>>, %arg6: memref<128x128xbf16, #tpu.memory_space<vmem>>, %arg7: memref<1x128xf32, #tpu.memory_space<vmem>>, %arg8: memref<128x128xbf16, #tpu.memory_space<vmem>>, %arg9: memref<1x128xf32, #tpu.memory_space<vmem>>, %arg10: memref<128x128xbf16, #tpu.memory_space<vmem>>, %arg11: memref<1x128xf32, #tpu.memory_space<vmem>>, %arg12: memref<128x4xbf16, #tpu.memory_space<vmem>>, %arg13: memref<1x4xf32, #tpu.memory_space<vmem>>, %arg14: memref<8x4xf32, #tpu.memory_space<vmem>>) attributes {dimension_semantics = [#tpu.dimension_semantics<parallel>], iteration_bounds = array<i64: 1>, scalar_prefetch = 0 : i64, scratch_operands = 0 : i64, tpu.core_type = #tpu.core_type<tc>, window_params = [{transform_indices = @transform_0, window_bounds = array<i64: 8, 16>}, {pipeline_mode = #tpu.pipeline_mode<synchronous>, transform_indices = @transform_1, window_bounds = array<i64: 16, 128>}, {pipeline_mode = #tpu.pipeline_mode<synchronous>, transform_indices = @transform_2, window_bounds = array<i64: 1, 128>}, {pipeline_mode = #tpu.pipeline_mode<synchronous>, transform_indices = @transform_3, window_bounds = array<i64: 128, 128>}, {pipeline_mode = #tpu.pipeline_mode<synchronous>, transform_indices = @transform_4, window_bounds = array<i64: 1, 128>}, {pipeline_mode = #tpu.pipeline_mode<synchronous>, transform_indices = @transform_5, window_bounds = array<i64: 128, 128>}, {pipeline_mode = #tpu.pipeline_mode<synchronous>, transform_indices = @transform_6, window_bounds = array<i64: 1, 128>}, {pipeline_mode = #tpu.pipeline_mode<synchronous>, transform_indices = @transform_7, window_bounds = array<i64: 128, 128>}, {pipeline_mode = #tpu.pipeline_mode<synchronous>, transform_indices = @transform_8, window_bounds = array<i64: 1, 128>}, {pipeline_mode = #tpu.pipeline_mode<synchronous>, transform_indices = @transform_9, window_bounds = array<i64: 128, 128>}, {pipeline_mode = #tpu.pipeline_mode<synchronous>, transform_indices = @transform_10, window_bounds = array<i64: 1, 128>}, {pipeline_mode = #tpu.pipeline_mode<synchronous>, transform_indices = @transform_11, window_bounds = array<i64: 128, 4>}, {pipeline_mode = #tpu.pipeline_mode<synchronous>, transform_indices = @transform_12, window_bounds = array<i64: 1, 4>}, {transform_indices = @transform_13, window_bounds = array<i64: 8, 4>}]} {
    %c0 = arith.constant 0 : index
    %c0_0 = arith.constant 0 : index
    %0 = vector.load %arg1[%c0, %c0_0] : memref<8x16xf32, #tpu.memory_space<vmem>>, vector<8x16xf32>
    %1 = arith.truncf %0 : vector<8x16xf32> to vector<8x16xbf16>
    %c0_1 = arith.constant 0 : index
    %c0_2 = arith.constant 0 : index
    %2 = vector.load %arg2[%c0_1, %c0_2] : memref<16x128xbf16, #tpu.memory_space<vmem>>, vector<16x128xbf16>
    %c0_3 = arith.constant 0 : index
    %c0_4 = arith.constant 0 : index
    %3 = vector.load %arg3[%c0_3, %c0_4] : memref<1x128xf32, #tpu.memory_space<vmem>>, vector<1x128xf32>
    %cst = arith.constant dense<0.000000e+00> : vector<8x128xf32>
    %4 = tpu.matmul %1, %2, %cst {dimension_numbers = #tpu.dot_dimension_numbers<[1], [0], [0], [1], [0, 0, 1, 1], [], []>} : vector<8x16xbf16>, vector<16x128xbf16>, vector<8x128xf32> -> vector<8x128xf32>
    %5 = vector.broadcast %3 : vector<1x128xf32> to vector<8x128xf32>
    %6 = arith.addf %4, %5 : vector<8x128xf32>
    %cst_5 = arith.constant 0.000000e+00 : f32
    %7 = vector.broadcast %cst_5 : f32 to vector<8x128xf32>
    %8 = arith.maximumf %6, %7 : vector<8x128xf32>
    %9 = arith.truncf %8 : vector<8x128xf32> to vector<8x128xbf16>
    %c0_6 = arith.constant 0 : index
    %c0_7 = arith.constant 0 : index
    %10 = vector.load %arg4[%c0_6, %c0_7] : memref<128x128xbf16, #tpu.memory_space<vmem>>, vector<128x128xbf16>
    %c0_8 = arith.constant 0 : index
    %c0_9 = arith.constant 0 : index
    %11 = vector.load %arg5[%c0_8, %c0_9] : memref<1x128xf32, #tpu.memory_space<vmem>>, vector<1x128xf32>
    %cst_10 = arith.constant dense<0.000000e+00> : vector<8x128xf32>
    %12 = tpu.matmul %9, %10, %cst_10 {dimension_numbers = #tpu.dot_dimension_numbers<[1], [0], [0], [1], [0, 0, 1, 1], [], []>} : vector<8x128xbf16>, vector<128x128xbf16>, vector<8x128xf32> -> vector<8x128xf32>
    %13 = vector.broadcast %11 : vector<1x128xf32> to vector<8x128xf32>
    %14 = arith.addf %12, %13 : vector<8x128xf32>
    %cst_11 = arith.constant 0.000000e+00 : f32
    %15 = vector.broadcast %cst_11 : f32 to vector<8x128xf32>
    %16 = arith.maximumf %14, %15 : vector<8x128xf32>
    %17 = arith.truncf %16 : vector<8x128xf32> to vector<8x128xbf16>
    %c0_12 = arith.constant 0 : index
    %c0_13 = arith.constant 0 : index
    %18 = vector.load %arg6[%c0_12, %c0_13] : memref<128x128xbf16, #tpu.memory_space<vmem>>, vector<128x128xbf16>
    %c0_14 = arith.constant 0 : index
    %c0_15 = arith.constant 0 : index
    %19 = vector.load %arg7[%c0_14, %c0_15] : memref<1x128xf32, #tpu.memory_space<vmem>>, vector<1x128xf32>
    %cst_16 = arith.constant dense<0.000000e+00> : vector<8x128xf32>
    %20 = tpu.matmul %17, %18, %cst_16 {dimension_numbers = #tpu.dot_dimension_numbers<[1], [0], [0], [1], [0, 0, 1, 1], [], []>} : vector<8x128xbf16>, vector<128x128xbf16>, vector<8x128xf32> -> vector<8x128xf32>
    %21 = vector.broadcast %19 : vector<1x128xf32> to vector<8x128xf32>
    %22 = arith.addf %20, %21 : vector<8x128xf32>
    %cst_17 = arith.constant 0.000000e+00 : f32
    %23 = vector.broadcast %cst_17 : f32 to vector<8x128xf32>
    %24 = arith.maximumf %22, %23 : vector<8x128xf32>
    %25 = arith.truncf %24 : vector<8x128xf32> to vector<8x128xbf16>
    %c0_18 = arith.constant 0 : index
    %c0_19 = arith.constant 0 : index
    %26 = vector.load %arg8[%c0_18, %c0_19] : memref<128x128xbf16, #tpu.memory_space<vmem>>, vector<128x128xbf16>
    %c0_20 = arith.constant 0 : index
    %c0_21 = arith.constant 0 : index
    %27 = vector.load %arg9[%c0_20, %c0_21] : memref<1x128xf32, #tpu.memory_space<vmem>>, vector<1x128xf32>
    %cst_22 = arith.constant dense<0.000000e+00> : vector<8x128xf32>
    %28 = tpu.matmul %25, %26, %cst_22 {dimension_numbers = #tpu.dot_dimension_numbers<[1], [0], [0], [1], [0, 0, 1, 1], [], []>} : vector<8x128xbf16>, vector<128x128xbf16>, vector<8x128xf32> -> vector<8x128xf32>
    %29 = vector.broadcast %27 : vector<1x128xf32> to vector<8x128xf32>
    %30 = arith.addf %28, %29 : vector<8x128xf32>
    %cst_23 = arith.constant 0.000000e+00 : f32
    %31 = vector.broadcast %cst_23 : f32 to vector<8x128xf32>
    %32 = arith.maximumf %30, %31 : vector<8x128xf32>
    %33 = arith.truncf %32 : vector<8x128xf32> to vector<8x128xbf16>
    %c0_24 = arith.constant 0 : index
    %c0_25 = arith.constant 0 : index
    %34 = vector.load %arg10[%c0_24, %c0_25] : memref<128x128xbf16, #tpu.memory_space<vmem>>, vector<128x128xbf16>
    %c0_26 = arith.constant 0 : index
    %c0_27 = arith.constant 0 : index
    %35 = vector.load %arg11[%c0_26, %c0_27] : memref<1x128xf32, #tpu.memory_space<vmem>>, vector<1x128xf32>
    %cst_28 = arith.constant dense<0.000000e+00> : vector<8x128xf32>
    %36 = tpu.matmul %33, %34, %cst_28 {dimension_numbers = #tpu.dot_dimension_numbers<[1], [0], [0], [1], [0, 0, 1, 1], [], []>} : vector<8x128xbf16>, vector<128x128xbf16>, vector<8x128xf32> -> vector<8x128xf32>
    %37 = vector.broadcast %35 : vector<1x128xf32> to vector<8x128xf32>
    %38 = arith.addf %36, %37 : vector<8x128xf32>
    %cst_29 = arith.constant 0.000000e+00 : f32
    %39 = vector.broadcast %cst_29 : f32 to vector<8x128xf32>
    %40 = arith.maximumf %38, %39 : vector<8x128xf32>
    %41 = arith.truncf %40 : vector<8x128xf32> to vector<8x128xbf16>
    %c0_30 = arith.constant 0 : index
    %c0_31 = arith.constant 0 : index
    %42 = vector.load %arg12[%c0_30, %c0_31] : memref<128x4xbf16, #tpu.memory_space<vmem>>, vector<128x4xbf16>
    %c0_32 = arith.constant 0 : index
    %c0_33 = arith.constant 0 : index
    %43 = vector.load %arg13[%c0_32, %c0_33] : memref<1x4xf32, #tpu.memory_space<vmem>>, vector<1x4xf32>
    %cst_34 = arith.constant dense<0.000000e+00> : vector<8x4xf32>
    %44 = tpu.matmul %41, %42, %cst_34 {dimension_numbers = #tpu.dot_dimension_numbers<[1], [0], [0], [1], [0, 0, 1, 1], [], []>} : vector<8x128xbf16>, vector<128x4xbf16>, vector<8x4xf32> -> vector<8x4xf32>
    %45 = vector.broadcast %43 : vector<1x4xf32> to vector<8x4xf32>
    %46 = arith.addf %44, %45 : vector<8x4xf32>
    %c0_35 = arith.constant 0 : index
    %c0_36 = arith.constant 0 : index
    %47 = vector.load %arg14[%c0_35, %c0_36] : memref<8x4xf32, #tpu.memory_space<vmem>>, vector<8x4xf32>
    tpu.vector_store %arg14[%c0_35, %c0_36], %46 {strides = array<i32>} : memref<8x4xf32, #tpu.memory_space<vmem>>, vector<8x4xf32>,
    return
  }
  func.func @transform_0(%arg0: i32) -> (i32, i32) {
    %c0_i32 = arith.constant 0 : i32
    %c0_i32_0 = arith.constant 0 : i32
    return %arg0, %c0_i32 : i32, i32
  }
  func.func @transform_1(%arg0: i32) -> (i32, i32) {
    %c0_i32 = arith.constant 0 : i32
    %c0_i32_0 = arith.constant 0 : i32
    %c0_i32_1 = arith.constant 0 : i32
    return %c0_i32, %c0_i32_0 : i32, i32
  }
  func.func @transform_2(%arg0: i32) -> (i32, i32) {
    %c0_i32 = arith.constant 0 : i32
    %c0_i32_0 = arith.constant 0 : i32
    %c0_i32_1 = arith.constant 0 : i32
    return %c0_i32, %c0_i32_0 : i32, i32
  }
  func.func @transform_3(%arg0: i32) -> (i32, i32) {
    %c0_i32 = arith.constant 0 : i32
    %c0_i32_0 = arith.constant 0 : i32
    %c0_i32_1 = arith.constant 0 : i32
    return %c0_i32, %c0_i32_0 : i32, i32
  }
  func.func @transform_4(%arg0: i32) -> (i32, i32) {
    %c0_i32 = arith.constant 0 : i32
    %c0_i32_0 = arith.constant 0 : i32
    %c0_i32_1 = arith.constant 0 : i32
    return %c0_i32, %c0_i32_0 : i32, i32
  }
  func.func @transform_5(%arg0: i32) -> (i32, i32) {
    %c0_i32 = arith.constant 0 : i32
    %c0_i32_0 = arith.constant 0 : i32
    %c0_i32_1 = arith.constant 0 : i32
    return %c0_i32, %c0_i32_0 : i32, i32
  }
  func.func @transform_6(%arg0: i32) -> (i32, i32) {
    %c0_i32 = arith.constant 0 : i32
    %c0_i32_0 = arith.constant 0 : i32
    %c0_i32_1 = arith.constant 0 : i32
    return %c0_i32, %c0_i32_0 : i32, i32
  }
  func.func @transform_7(%arg0: i32) -> (i32, i32) {
    %c0_i32 = arith.constant 0 : i32
    %c0_i32_0 = arith.constant 0 : i32
    %c0_i32_1 = arith.constant 0 : i32
    return %c0_i32, %c0_i32_0 : i32, i32
  }
  func.func @transform_8(%arg0: i32) -> (i32, i32) {
    %c0_i32 = arith.constant 0 : i32
    %c0_i32_0 = arith.constant 0 : i32
    %c0_i32_1 = arith.constant 0 : i32
    return %c0_i32, %c0_i32_0 : i32, i32
  }
  func.func @transform_9(%arg0: i32) -> (i32, i32) {
    %c0_i32 = arith.constant 0 : i32
    %c0_i32_0 = arith.constant 0 : i32
    %c0_i32_1 = arith.constant 0 : i32
    return %c0_i32, %c0_i32_0 : i32, i32
  }
  func.func @transform_10(%arg0: i32) -> (i32, i32) {
    %c0_i32 = arith.constant 0 : i32
    %c0_i32_0 = arith.constant 0 : i32
    %c0_i32_1 = arith.constant 0 : i32
    return %c0_i32, %c0_i32_0 : i32, i32
  }
  func.func @transform_11(%arg0: i32) -> (i32, i32) {
    %c0_i32 = arith.constant 0 : i32
    %c0_i32_0 = arith.constant 0 : i32
    %c0_i32_1 = arith.constant 0 : i32
    return %c0_i32, %c0_i32_0 : i32, i32
  }
  func.func @transform_12(%arg0: i32) -> (i32, i32) {
    %c0_i32 = arith.constant 0 : i32
    %c0_i32_0 = arith.constant 0 : i32
    %c0_i32_1 = arith.constant 0 : i32
    return %c0_i32, %c0_i32_0 : i32, i32
  }
  func.func @transform_13(%arg0: i32) -> (i32, i32) {
    %c0_i32 = arith.constant 0 : i32
    %c0_i32_0 = arith.constant 0 : i32
    return %arg0, %c0_i32 : i32, i32
  }
}

</mosaic_0001>

<llo_original>
// kernel: tpu_custom_call.1
$region0: #{tpu_custom_call.1}
  #allocation0 [shape = 'u32[]', space=smem, size = 0x4, offset = 0x4, fixed_abs, tag = 'smem constant byte address 0x4 - core index']
  #allocation1 [shape = 'u32[144,128]{1,0:T(1,128)}', space=vmem, size = 0x12000, scoped, tag = 'internal scratch']
  %s0 = inlined_call_operand.vmem [shape: f32[2,16], index: 0, kind: input, shape index: {}]
  %s1 = inlined_call_operand.hbm [shape: bf16[16,128], index: 1, kind: input, shape index: {}]
  %s2 = inlined_call_operand.vmem [shape: f32[1,128], index: 2, kind: input, shape index: {}]
  %s3 = inlined_call_operand.vmem [shape: bf16[128,128], index: 3, kind: input, shape index: {}]
  %s4 = inlined_call_operand.vmem [shape: f32[1,128], index: 4, kind: input, shape index: {}]
  %s5 = inlined_call_operand.hbm [shape: bf16[128,128], index: 5, kind: input, shape index: {}]
  %s6 = inlined_call_operand.vmem [shape: f32[1,128], index: 6, kind: input, shape index: {}]
  %s7 = inlined_call_operand.hbm [shape: bf16[128,128], index: 7, kind: input, shape index: {}]
  %s8 = inlined_call_operand.vmem [shape: f32[1,128], index: 8, kind: input, shape index: {}]
  %s9 = inlined_call_operand.hbm [shape: bf16[128,128], index: 9, kind: input, shape index: {}]
  %s10 = inlined_call_operand.vmem [shape: f32[1,128], index: 10, kind: input, shape index: {}]
  %s11 = inlined_call_operand.vmem [shape: bf16[128,4], index: 11, kind: input, shape index: {}]
  %s12 = inlined_call_operand.vmem [shape: f32[1,4], index: 12, kind: input, shape index: {}]
  %s13 = inlined_call_operand.hbm [shape: f32[2,4], index: 13, kind: output, shape index: {}]
  %s14 = sld [smem:[#allocation0]]
  $region78: #{tpu_custom_call.1} parent=0
    _
  %s16 = ssub.s32 1, %s14
  %s17 = scalar_select 0, %s16, %s14
  $region1: #{tpu_custom_call.1} parent=0
    #allocation2 [shape = 'u8[4096]{0}', space=vmem, size = 0x1000, scoped, tag = 'input window, operand 1, single buffered']
    #allocation3 [shape = 's32[1]{0}', space=sflag, size = 0x4, scoped, tag = 'scoped memory for tpu_custom_call.1']
    #allocation4 [shape = 's32[1]{0}', space=sflag, size = 0x4, scoped, tag = 'scoped memory for tpu_custom_call.1']
    #allocation5 [shape = 'u8[32768]{0}', space=vmem, size = 0x8000, scoped, tag = 'input window, operand 5, single buffered']
    #allocation6 [shape = 's32[1]{0}', space=sflag, size = 0x4, scoped, tag = 'scoped memory for tpu_custom_call.1']
    #allocation7 [shape = 'u8[32768]{0}', space=vmem, size = 0x8000, scoped, tag = 'input window, operand 7, single buffered']
    #allocation8 [shape = 'u8[32768]{0}', space=vmem, size = 0x8000, scoped, tag = 'input window, operand 9, single buffered']
    #allocation9 [shape = 's32[1]{0}', space=sflag, size = 0x4, scoped, tag = 'scoped memory for tpu_custom_call.1']
    #allocation10 [shape = 'u8[4096]{0}', space=vmem, size = 0x1000, scoped, tag = 'output window, operand 0, single buffered']
    %18 = vsyncpa [#allocation3], 0
    %19 = vsyncpa [#allocation6], 0
    %20 = vsyncpa [#allocation9], 0
    %21 = vsyncpa [#allocation4], 0
    // Predicated region
    $region2: #{tpu_custom_call.1} parent=1 // pred_check
      _
    $region3: #{tpu_custom_call.1} parent=1 // pred_check_branch
      %23 = sbr.rel (0) target = $region5
    $region4: #{tpu_custom_call.1} parent=1 // pred_region
      _
    $region5: #{tpu_custom_call.1} parent=1 // pred_fallthru
      _
    // Predicated region
    $region6: #{tpu_custom_call.1} parent=1 // pred_check
      _
    $region7: #{tpu_custom_call.1} parent=1 // pred_check_branch
      %25 = sbr.rel (0) target = $region9
    $region8: #{tpu_custom_call.1} parent=1 // pred_region
      %s27 = ssub.s32 128, 128
      %28 = vsyncadd [#allocation3], %s27
      %s29 = sshll.u32 [#allocation2], 4
      %s30 = int_to_ptr.vmem [resolvable:$true] %s29
      %35 = dma.hbm_to_vmem [thread:$0]  %s1, 128, %s30, [#allocation3], 64, 64, 4
    $region9: #{tpu_custom_call.1} parent=1 // pred_fallthru
      _
    // Predicated region
    $region10: #{tpu_custom_call.1} parent=1 // pred_check
      _
    $region11: #{tpu_custom_call.1} parent=1 // pred_check_branch
      %37 = sbr.rel (0) target = $region13
    $region12: #{tpu_custom_call.1} parent=1 // pred_region
      _
    $region13: #{tpu_custom_call.1} parent=1 // pred_fallthru
      _
    // Predicated region
    $region14: #{tpu_custom_call.1} parent=1 // pred_check
      _
    $region15: #{tpu_custom_call.1} parent=1 // pred_check_branch
      %39 = sbr.rel (0) target = $region17
    $region16: #{tpu_custom_call.1} parent=1 // pred_region
      _
    $region17: #{tpu_custom_call.1} parent=1 // pred_fallthru
      _
    // Predicated region
    $region18: #{tpu_custom_call.1} parent=1 // pred_check
      _
    $region19: #{tpu_custom_call.1} parent=1 // pred_check_branch
      %41 = sbr.rel (0) target = $region21
    $region20: #{tpu_custom_call.1} parent=1 // pred_region
      _
    $region21: #{tpu_custom_call.1} parent=1 // pred_fallthru
      _
    // Predicated region
    $region22: #{tpu_custom_call.1} parent=1 // pred_check
      _
    $region23: #{tpu_custom_call.1} parent=1 // pred_check_branch
      %43 = sbr.rel (0) target = $region25
    $region24: #{tpu_custom_call.1} parent=1 // pred_region
      %s45 = ssub.s32 1024, 1024
      %46 = vsyncadd [#allocation6], %s45
      %s47 = sshll.u32 [#allocation5], 4
      %s48 = int_to_ptr.vmem [resolvable:$true] %s47
      %53 = dma.hbm_to_vmem [thread:$0]  %s5, 1024, %s48, [#allocation6], 64, 64, 4
    $region25: #{tpu_custom_call.1} parent=1 // pred_fallthru
      _
    // Predicated region
    $region26: #{tpu_custom_call.1} parent=1 // pred_check
      _
    $region27: #{tpu_custom_call.1} parent=1 // pred_check_branch
      %55 = sbr.rel (0) target = $region29
    $region28: #{tpu_custom_call.1} parent=1 // pred_region
      _
    $region29: #{tpu_custom_call.1} parent=1 // pred_fallthru
      _
    // Predicated region
    $region30: #{tpu_custom_call.1} parent=1 // pred_check
      _
    $region31: #{tpu_custom_call.1} parent=1 // pred_check_branch
      %57 = sbr.rel (0) target = $region33
    $region32: #{tpu_custom_call.1} parent=1 // pred_region
      %s59 = ssub.s32 1024, 1024
      %60 = vsyncadd [#allocation6], %s59
      %s61 = sshll.u32 [#allocation7], 4
      %s62 = int_to_ptr.vmem [resolvable:$true] %s61
      %67 = dma.hbm_to_vmem [thread:$0]  %s7, 1024, %s62, [#allocation6], 64, 64, 4
    $region33: #{tpu_custom_call.1} parent=1 // pred_fallthru
      _
    // Predicated region
    $region34: #{tpu_custom_call.1} parent=1 // pred_check
      _
    $region35: #{tpu_custom_call.1} parent=1 // pred_check_branch
      %69 = sbr.rel (0) target = $region37
    $region36: #{tpu_custom_call.1} parent=1 // pred_region
      _
    $region37: #{tpu_custom_call.1} parent=1 // pred_fallthru
      _
    // Predicated region
    $region38: #{tpu_custom_call.1} parent=1 // pred_check
      _
    $region39: #{tpu_custom_call.1} parent=1 // pred_check_branch
      %71 = sbr.rel (0) target = $region41
    $region40: #{tpu_custom_call.1} parent=1 // pred_region
      %s73 = ssub.s32 1024, 1024
      %74 = vsyncadd [#allocation9], %s73
      %s75 = sshll.u32 [#allocation8], 4
      %s76 = int_to_ptr.vmem [resolvable:$true] %s75
      %81 = dma.hbm_to_vmem [thread:$0]  %s9, 1024, %s76, [#allocation9], 64, 64, 4
    $region41: #{tpu_custom_call.1} parent=1 // pred_fallthru
      _
    // Predicated region
    $region42: #{tpu_custom_call.1} parent=1 // pred_check
      _
    $region43: #{tpu_custom_call.1} parent=1 // pred_check_branch
      %83 = sbr.rel (0) target = $region45
    $region44: #{tpu_custom_call.1} parent=1 // pred_region
      _
    $region45: #{tpu_custom_call.1} parent=1 // pred_fallthru
      _
    // Predicated region
    $region46: #{tpu_custom_call.1} parent=1 // pred_check
      _
    $region47: #{tpu_custom_call.1} parent=1 // pred_check_branch
      %85 = sbr.rel (0) target = $region49
    $region48: #{tpu_custom_call.1} parent=1 // pred_region
      _
    $region49: #{tpu_custom_call.1} parent=1 // pred_fallthru
      _
    // Predicated region
    $region50: #{tpu_custom_call.1} parent=1 // pred_check
      _
    $region51: #{tpu_custom_call.1} parent=1 // pred_check_branch
      %87 = sbr.rel (0) target = $region53
    $region52: #{tpu_custom_call.1} parent=1 // pred_region
      _
    $region53: #{tpu_custom_call.1} parent=1 // pred_fallthru
      _
    // Predicated region
    $region54: #{tpu_custom_call.1} parent=1 // pred_check
      _
    $region55: #{tpu_custom_call.1} parent=1 // pred_check_branch
      %89 = sbr.rel (0) target = $region57
    $region56: #{tpu_custom_call.1} parent=1 // pred_region
      %90 = dma.done [#allocation3], 128
    $region57: #{tpu_custom_call.1} parent=1 // pred_fallthru
      _
    // Predicated region
    $region58: #{tpu_custom_call.1} parent=1 // pred_check
      _
    $region59: #{tpu_custom_call.1} parent=1 // pred_check_branch
      %92 = sbr.rel (0) target = $region61
    $region60: #{tpu_custom_call.1} parent=1 // pred_region
      %93 = dma.done [#allocation6], 1024
    $region61: #{tpu_custom_call.1} parent=1 // pred_fallthru
      _
    // Predicated region
    $region62: #{tpu_custom_call.1} parent=1 // pred_check
      _
    $region63: #{tpu_custom_call.1} parent=1 // pred_check_branch
      %95 = sbr.rel (0) target = $region65
    $region64: #{tpu_custom_call.1} parent=1 // pred_region
      %96 = dma.done [#allocation6], 1024
    $region65: #{tpu_custom_call.1} parent=1 // pred_fallthru
      _
    // Predicated region
    $region66: #{tpu_custom_call.1} parent=1 // pred_check
      _
    $region67: #{tpu_custom_call.1} parent=1 // pred_check_branch
      %98 = sbr.rel (0) target = $region69
    $region68: #{tpu_custom_call.1} parent=1 // pred_region
      %99 = dma.done [#allocation9], 1024
    $region69: #{tpu_custom_call.1} parent=1 // pred_fallthru
      _
    %v101 = vld [vmem:[%s0] sm:$0xff]
    %v102 = vpack.c.bf16 %v101, %v101
    %v103 = vld [vmem:[#allocation2] sm:$0xf]
    %v104 = vld [vmem:[#allocation2 + $0x4] sm:$0xf]
    %v105 = vld [vmem:[%s2] sm:$0x1]
    %v107 = vlaneseq
    %v108 = vshrl.u32 %v107, 7
    %v109 = vsub.s32 0, %v108
    %v110 = vrot.slane %v105, %v109
    %v114 = vunpack.c.l.b16 %v103
    %v115 = vunpack.c.l.b16 %v104
    %v116 = vpack.c.b16 %v115, %v114
    %vm118 = vcmask 130048
    %v120 = vsel %vm118, %v102, 0
    %122 = vmatprep.subr.bf16.mxu0 0
    %123 = vmatpush1.bf16.msra.mxu0 0
    %124 = vmatprep.subr.bf16.mxu0 0
    %125 = vmatpush1.bf16.msra.mxu0 0
    %126 = vmatprep.subr.bf16.mxu0 0
    %127 = vmatpush1.bf16.msra.mxu0 0
    %128 = vmatprep.subr.bf16.mxu0 0
    %129 = vmatpush1.bf16.msra.mxu0 0
    %130 = vmatprep.subr.bf16.mxu0 0
    %131 = vmatpush1.bf16.msra.mxu0 0
    %132 = vmatprep.subr.bf16.mxu0 0
    %133 = vmatpush1.bf16.msra.mxu0 0
    %134 = vmatprep.subr.bf16.mxu0 0
    %135 = vmatpush1.bf16.msra.mxu0 0
    %136 = vmatprep.subr.bf16.mxu0 0
    %137 = vmatpush1.bf16.msra.mxu0 %v116
    %138 = vmatprep.subr.bf16.mxu0 0
    %139 = vmatpush2.bf16.msra.mxu0 0
    %140 = vmatprep.subr.bf16.mxu0 0
    %141 = vmatpush2.bf16.msra.mxu0 0
    %142 = vmatprep.subr.bf16.mxu0 0
    %143 = vmatpush2.bf16.msra.mxu0 0
    %144 = vmatprep.subr.bf16.mxu0 0
    %145 = vmatpush2.bf16.msra.mxu0 0
    %146 = vmatprep.subr.bf16.mxu0 0
    %147 = vmatpush2.bf16.msra.mxu0 0
    %148 = vmatprep.subr.bf16.mxu0 0
    %149 = vmatpush2.bf16.msra.mxu0 0
    %150 = vmatprep.subr.bf16.mxu0 0
    %151 = vmatpush2.bf16.msra.mxu0 0
    %152 = vmatprep.subr.bf16.mxu0 0
    %153 = vmatpush2.bf16.msra.mxu0 0
    %154 = vmatprep.mubr.bf16.mxu0 0
    %155 = vmatmul.mubr.bf16.gmra.mxu0 %v120
    %v156 = vpop.f32.mrf.mxu0
    %v157 = vadd.f32 %v110, %v156
    %v158 = vpop.f32.mrf.mxu0
    %v159 = vpop.f32.mrf.mxu0
    %v160 = vpop.f32.mrf.mxu0
    %161 = vdwg.mxu0
    %v162 = vmax.f32 %v157, 0.0
    %v163 = vpack.c.bf16 %v162, %v162
    %v164 = vld [vmem:[%s3] sm:$0xf]
    %v165 = vld [vmem:[%s3 + $0x4] sm:$0xf]
    %v166 = vld [vmem:[%s3 + $0x8] sm:$0xf]
    %v167 = vld [vmem:[%s3 + $0xc] sm:$0xf]
    %v168 = vld [vmem:[%s3 + $0x10] sm:$0xf]
    %v169 = vld [vmem:[%s3 + $0x14] sm:$0xf]
    %v170 = vld [vmem:[%s3 + $0x18] sm:$0xf]
    %v171 = vld [vmem:[%s3 + $0x1c] sm:$0xf]
    %v172 = vld [vmem:[%s3 + $0x20] sm:$0xf]
    %v173 = vld [vmem:[%s3 + $0x24] sm:$0xf]
    %v174 = vld [vmem:[%s3 + $0x28] sm:$0xf]
    %v175 = vld [vmem:[%s3 + $0x2c] sm:$0xf]
    %v176 = vld [vmem:[%s3 + $0x30] sm:$0xf]
    %v177 = vld [vmem:[%s3 + $0x34] sm:$0xf]
    %v178 = vld [vmem:[%s3 + $0x38] sm:$0xf]
    %v179 = vld [vmem:[%s3 + $0x3c] sm:$0xf]
    %v180 = vld [vmem:[%s4] sm:$0x1]
    %v182 = vlaneseq
    %v183 = vshrl.u32 %v182, 7
    %v184 = vsub.s32 0, %v183
    %v185 = vrot.slane %v180, %v184
    %v203 = vunpack.c.l.b16 %v164
    %v204 = vunpack.c.l.b16 %v165
    %v205 = vunpack.c.l.b16 %v166
    %v206 = vunpack.c.l.b16 %v167
    %v207 = vunpack.c.l.b16 %v168
    %v208 = vunpack.c.l.b16 %v169
    %v209 = vunpack.c.l.b16 %v170
    %v210 = vunpack.c.l.b16 %v171
    %v211 = vunpack.c.l.b16 %v172
    %v212 = vunpack.c.l.b16 %v173
    %v213 = vunpack.c.l.b16 %v174
    %v214 = vunpack.c.l.b16 %v175
    %v215 = vunpack.c.l.b16 %v176
    %v216 = vunpack.c.l.b16 %v177
    %v217 = vunpack.c.l.b16 %v178
    %v218 = vunpack.c.l.b16 %v179
    %v219 = vpack.c.b16 %v204, %v203
    %v220 = vpack.c.b16 %v206, %v205
    %v221 = vpack.c.b16 %v208, %v207
    %v222 = vpack.c.b16 %v210, %v209
    %v223 = vpack.c.b16 %v212, %v211
    %v224 = vpack.c.b16 %v214, %v213
    %v225 = vpack.c.b16 %v216, %v215
    %v226 = vpack.c.b16 %v218, %v217
    %235 = vmatprep.subr.bf16.mxu0 0
    %236 = vmatpush1.bf16.msra.mxu0 %v226
    %237 = vmatprep.subr.bf16.mxu0 0
    %238 = vmatpush1.bf16.msra.mxu0 %v225
    %239 = vmatprep.subr.bf16.mxu0 0
    %240 = vmatpush1.bf16.msra.mxu0 %v224
    %241 = vmatprep.subr.bf16.mxu0 0
    %242 = vmatpush1.bf16.msra.mxu0 %v223
    %243 = vmatprep.subr.bf16.mxu0 0
    %244 = vmatpush1.bf16.msra.mxu0 %v222
    %245 = vmatprep.subr.bf16.mxu0 0
    %246 = vmatpush1.bf16.msra.mxu0 %v221
    %247 = vmatprep.subr.bf16.mxu0 0
    %248 = vmatpush1.bf16.msra.mxu0 %v220
    %249 = vmatprep.subr.bf16.mxu0 0
    %250 = vmatpush1.bf16.msra.mxu0 %v219
    %251 = vmatprep.subr.bf16.mxu0 0
    %252 = vmatpush2.bf16.msra.mxu0 0
    %253 = vmatprep.subr.bf16.mxu0 0
    %254 = vmatpush2.bf16.msra.mxu0 0
    %255 = vmatprep.subr.bf16.mxu0 0
    %256 = vmatpush2.bf16.msra.mxu0 0
    %257 = vmatprep.subr.bf16.mxu0 0
    %258 = vmatpush2.bf16.msra.mxu0 0
    %259 = vmatprep.subr.bf16.mxu0 0
    %260 = vmatpush2.bf16.msra.mxu0 0
    %261 = vmatprep.subr.bf16.mxu0 0
    %262 = vmatpush2.bf16.msra.mxu0 0
    %263 = vmatprep.subr.bf16.mxu0 0
    %264 = vmatpush2.bf16.msra.mxu0 0
    %265 = vmatprep.subr.bf16.mxu0 0
    %266 = vmatpush2.bf16.msra.mxu0 0
    %267 = vmatprep.mubr.bf16.mxu0 0
    %268 = vmatmul.mubr.bf16.gmra.mxu0 %v163
    %v269 = vpop.f32.mrf.mxu0
    %v270 = vadd.f32 %v185, %v269
    %v271 = vpop.f32.mrf.mxu0
    %v272 = vpop.f32.mrf.mxu0
    %v273 = vpop.f32.mrf.mxu0
    %274 = vdwg.mxu0
    %v275 = vmax.f32 %v270, 0.0
    %v276 = vpack.c.bf16 %v275, %v275
    %v277 = vld [vmem:[#allocation5] sm:$0xf]
    %v278 = vld [vmem:[#allocation5 + $0x4] sm:$0xf]
    %v279 = vld [vmem:[#allocation5 + $0x8] sm:$0xf]
    %v280 = vld [vmem:[#allocation5 + $0xc] sm:$0xf]
    %v281 = vld [vmem:[#allocation5 + $0x10] sm:$0xf]
    %v282 = vld [vmem:[#allocation5 + $0x14] sm:$0xf]
    %v283 = vld [vmem:[#allocation5 + $0x18] sm:$0xf]
    %v284 = vld [vmem:[#allocation5 + $0x1c] sm:$0xf]
    %v285 = vld [vmem:[#allocation5 + $0x20] sm:$0xf]
    %v286 = vld [vmem:[#allocation5 + $0x24] sm:$0xf]
    %v287 = vld [vmem:[#allocation5 + $0x28] sm:$0xf]
    %v288 = vld [vmem:[#allocation5 + $0x2c] sm:$0xf]
    %v289 = vld [vmem:[#allocation5 + $0x30] sm:$0xf]
    %v290 = vld [vmem:[#allocation5 + $0x34] sm:$0xf]
    %v291 = vld [vmem:[#allocation5 + $0x38] sm:$0xf]
    %v292 = vld [vmem:[#allocation5 + $0x3c] sm:$0xf]
    %v293 = vld [vmem:[%s6] sm:$0x1]
    %v295 = vlaneseq
    %v296 = vshrl.u32 %v295, 7
    %v297 = vsub.s32 0, %v296
    %v298 = vrot.slane %v293, %v297
    %v316 = vunpack.c.l.b16 %v277
    %v317 = vunpack.c.l.b16 %v278
    %v318 = vunpack.c.l.b16 %v279
    %v319 = vunpack.c.l.b16 %v280
    %v320 = vunpack.c.l.b16 %v281
    %v321 = vunpack.c.l.b16 %v282
    %v322 = vunpack.c.l.b16 %v283
    %v323 = vunpack.c.l.b16 %v284
    %v324 = vunpack.c.l.b16 %v285
    %v325 = vunpack.c.l.b16 %v286
    %v326 = vunpack.c.l.b16 %v287
    %v327 = vunpack.c.l.b16 %v288
    %v328 = vunpack.c.l.b16 %v289
    %v329 = vunpack.c.l.b16 %v290
    %v330 = vunpack.c.l.b16 %v291
    %v331 = vunpack.c.l.b16 %v292
    %v332 = vpack.c.b16 %v317, %v316
    %v333 = vpack.c.b16 %v319, %v318
    %v334 = vpack.c.b16 %v321, %v320
    %v335 = vpack.c.b16 %v323, %v322
    %v336 = vpack.c.b16 %v325, %v324
    %v337 = vpack.c.b16 %v327, %v326
    %v338 = vpack.c.b16 %v329, %v328
    %v339 = vpack.c.b16 %v331, %v330
    %348 = vmatprep.subr.bf16.mxu0 0
    %349 = vmatpush1.bf16.msra.mxu0 %v339
    %350 = vmatprep.subr.bf16.mxu0 0
    %351 = vmatpush1.bf16.msra.mxu0 %v338
    %352 = vmatprep.subr.bf16.mxu0 0
    %353 = vmatpush1.bf16.msra.mxu0 %v337
    %354 = vmatprep.subr.bf16.mxu0 0
    %355 = vmatpush1.bf16.msra.mxu0 %v336
    %356 = vmatprep.subr.bf16.mxu0 0
    %357 = vmatpush1.bf16.msra.mxu0 %v335
    %358 = vmatprep.subr.bf16.mxu0 0
    %359 = vmatpush1.bf16.msra.mxu0 %v334
    %360 = vmatprep.subr.bf16.mxu0 0
    %361 = vmatpush1.bf16.msra.mxu0 %v333
    %362 = vmatprep.subr.bf16.mxu0 0
    %363 = vmatpush1.bf16.msra.mxu0 %v332
    %364 = vmatprep.subr.bf16.mxu0 0
    %365 = vmatpush2.bf16.msra.mxu0 0
    %366 = vmatprep.subr.bf16.mxu0 0
    %367 = vmatpush2.bf16.msra.mxu0 0
    %368 = vmatprep.subr.bf16.mxu0 0
    %369 = vmatpush2.bf16.msra.mxu0 0
    %370 = vmatprep.subr.bf16.mxu0 0
    %371 = vmatpush2.bf16.msra.mxu0 0
    %372 = vmatprep.subr.bf16.mxu0 0
    %373 = vmatpush2.bf16.msra.mxu0 0
    %374 = vmatprep.subr.bf16.mxu0 0
    %375 = vmatpush2.bf16.msra.mxu0 0
    %376 = vmatprep.subr.bf16.mxu0 0
    %377 = vmatpush2.bf16.msra.mxu0 0
    %378 = vmatprep.subr.bf16.mxu0 0
    %379 = vmatpush2.bf16.msra.mxu0 0
    %380 = vmatprep.mubr.bf16.mxu0 0
    %381 = vmatmul.mubr.bf16.gmra.mxu0 %v276
    %v382 = vpop.f32.mrf.mxu0
    %v383 = vadd.f32 %v298, %v382
    %v384 = vpop.f32.mrf.mxu0
    %v385 = vpop.f32.mrf.mxu0
    %v386 = vpop.f32.mrf.mxu0
    %387 = vdwg.mxu0
    %v388 = vmax.f32 %v383, 0.0
    %v389 = vpack.c.bf16 %v388, %v388
    %v390 = vld [vmem:[#allocation7] sm:$0xf]
    %v391 = vld [vmem:[#allocation7 + $0x4] sm:$0xf]
    %v392 = vld [vmem:[#allocation7 + $0x8] sm:$0xf]
    %v393 = vld [vmem:[#allocation7 + $0xc] sm:$0xf]
    %v394 = vld [vmem:[#allocation7 + $0x10] sm:$0xf]
    %v395 = vld [vmem:[#allocation7 + $0x14] sm:$0xf]
    %v396 = vld [vmem:[#allocation7 + $0x18] sm:$0xf]
    %v397 = vld [vmem:[#allocation7 + $0x1c] sm:$0xf]
    %v398 = vld [vmem:[#allocation7 + $0x20] sm:$0xf]
    %v399 = vld [vmem:[#allocation7 + $0x24] sm:$0xf]
    %v400 = vld [vmem:[#allocation7 + $0x28] sm:$0xf]
    %v401 = vld [vmem:[#allocation7 + $0x2c] sm:$0xf]
    %v402 = vld [vmem:[#allocation7 + $0x30] sm:$0xf]
    %v403 = vld [vmem:[#allocation7 + $0x34] sm:$0xf]
    %v404 = vld [vmem:[#allocation7 + $0x38] sm:$0xf]
    %v405 = vld [vmem:[#allocation7 + $0x3c] sm:$0xf]
    %v406 = vld [vmem:[%s8] sm:$0x1]
    %v408 = vlaneseq
    %v409 = vshrl.u32 %v408, 7
    %v410 = vsub.s32 0, %v409
    %v411 = vrot.slane %v406, %v410
    %v429 = vunpack.c.l.b16 %v390
    %v430 = vunpack.c.l.b16 %v391
    %v431 = vunpack.c.l.b16 %v392
    %v432 = vunpack.c.l.b16 %v393
    %v433 = vunpack.c.l.b16 %v394
    %v434 = vunpack.c.l.b16 %v395
    %v435 = vunpack.c.l.b16 %v396
    %v436 = vunpack.c.l.b16 %v397
    %v437 = vunpack.c.l.b16 %v398
    %v438 = vunpack.c.l.b16 %v399
    %v439 = vunpack.c.l.b16 %v400
    %v440 = vunpack.c.l.b16 %v401
    %v441 = vunpack.c.l.b16 %v402
    %v442 = vunpack.c.l.b16 %v403
    %v443 = vunpack.c.l.b16 %v404
    %v444 = vunpack.c.l.b16 %v405
    %v445 = vpack.c.b16 %v430, %v429
    %v446 = vpack.c.b16 %v432, %v431
    %v447 = vpack.c.b16 %v434, %v433
    %v448 = vpack.c.b16 %v436, %v435
    %v449 = vpack.c.b16 %v438, %v437
    %v450 = vpack.c.b16 %v440, %v439
    %v451 = vpack.c.b16 %v442, %v441
    %v452 = vpack.c.b16 %v444, %v443
    %461 = vmatprep.subr.bf16.mxu0 0
    %462 = vmatpush1.bf16.msra.mxu0 %v452
    %463 = vmatprep.subr.bf16.mxu0 0
    %464 = vmatpush1.bf16.msra.mxu0 %v451
    %465 = vmatprep.subr.bf16.mxu0 0
    %466 = vmatpush1.bf16.msra.mxu0 %v450
    %467 = vmatprep.subr.bf16.mxu0 0
    %468 = vmatpush1.bf16.msra.mxu0 %v449
    %469 = vmatprep.subr.bf16.mxu0 0
    %470 = vmatpush1.bf16.msra.mxu0 %v448
    %471 = vmatprep.subr.bf16.mxu0 0
    %472 = vmatpush1.bf16.msra.mxu0 %v447
    %473 = vmatprep.subr.bf16.mxu0 0
    %474 = vmatpush1.bf16.msra.mxu0 %v446
    %475 = vmatprep.subr.bf16.mxu0 0
    %476 = vmatpush1.bf16.msra.mxu0 %v445
    %477 = vmatprep.subr.bf16.mxu0 0
    %478 = vmatpush2.bf16.msra.mxu0 0
    %479 = vmatprep.subr.bf16.mxu0 0
    %480 = vmatpush2.bf16.msra.mxu0 0
    %481 = vmatprep.subr.bf16.mxu0 0
    %482 = vmatpush2.bf16.msra.mxu0 0
    %483 = vmatprep.subr.bf16.mxu0 0
    %484 = vmatpush2.bf16.msra.mxu0 0
    %485 = vmatprep.subr.bf16.mxu0 0
    %486 = vmatpush2.bf16.msra.mxu0 0
    %487 = vmatprep.subr.bf16.mxu0 0
    %488 = vmatpush2.bf16.msra.mxu0 0
    %489 = vmatprep.subr.bf16.mxu0 0
    %490 = vmatpush2.bf16.msra.mxu0 0
    %491 = vmatprep.subr.bf16.mxu0 0
    %492 = vmatpush2.bf16.msra.mxu0 0
    %493 = vmatprep.mubr.bf16.mxu0 0
    %494 = vmatmul.mubr.bf16.gmra.mxu0 %v389
    %v495 = vpop.f32.mrf.mxu0
    %v496 = vadd.f32 %v411, %v495
    %v497 = vpop.f32.mrf.mxu0
    %v498 = vpop.f32.mrf.mxu0
    %v499 = vpop.f32.mrf.mxu0
    %500 = vdwg.mxu0
    %v501 = vmax.f32 %v496, 0.0
    %v502 = vpack.c.bf16 %v501, %v501
    %v503 = vld [vmem:[#allocation8] sm:$0xf]
    %v504 = vld [vmem:[#allocation8 + $0x4] sm:$0xf]
    %v505 = vld [vmem:[#allocation8 + $0x8] sm:$0xf]
    %v506 = vld [vmem:[#allocation8 + $0xc] sm:$0xf]
    %v507 = vld [vmem:[#allocation8 + $0x10] sm:$0xf]
    %v508 = vld [vmem:[#allocation8 + $0x14] sm:$0xf]
    %v509 = vld [vmem:[#allocation8 + $0x18] sm:$0xf]
    %v510 = vld [vmem:[#allocation8 + $0x1c] sm:$0xf]
    %v511 = vld [vmem:[#allocation8 + $0x20] sm:$0xf]
    %v512 = vld [vmem:[#allocation8 + $0x24] sm:$0xf]
    %v513 = vld [vmem:[#allocation8 + $0x28] sm:$0xf]
    %v514 = vld [vmem:[#allocation8 + $0x2c] sm:$0xf]
    %v515 = vld [vmem:[#allocation8 + $0x30] sm:$0xf]
    %v516 = vld [vmem:[#allocation8 + $0x34] sm:$0xf]
    %v517 = vld [vmem:[#allocation8 + $0x38] sm:$0xf]
    %v518 = vld [vmem:[#allocation8 + $0x3c] sm:$0xf]
    %v519 = vld [vmem:[%s10] sm:$0x1]
    %v521 = vlaneseq
    %v522 = vshrl.u32 %v521, 7
    %v523 = vsub.s32 0, %v522
    %v524 = vrot.slane %v519, %v523
    %v542 = vunpack.c.l.b16 %v503
    %v543 = vunpack.c.l.b16 %v504
    %v544 = vunpack.c.l.b16 %v505
    %v545 = vunpack.c.l.b16 %v506
    %v546 = vunpack.c.l.b16 %v507
    %v547 = vunpack.c.l.b16 %v508
    %v548 = vunpack.c.l.b16 %v509
    %v549 = vunpack.c.l.b16 %v510
    %v550 = vunpack.c.l.b16 %v511
    %v551 = vunpack.c.l.b16 %v512
    %v552 = vunpack.c.l.b16 %v513
    %v553 = vunpack.c.l.b16 %v514
    %v554 = vunpack.c.l.b16 %v515
    %v555 = vunpack.c.l.b16 %v516
    %v556 = vunpack.c.l.b16 %v517
    %v557 = vunpack.c.l.b16 %v518
    %v558 = vpack.c.b16 %v543, %v542
    %v559 = vpack.c.b16 %v545, %v544
    %v560 = vpack.c.b16 %v547, %v546
    %v561 = vpack.c.b16 %v549, %v548
    %v562 = vpack.c.b16 %v551, %v550
    %v563 = vpack.c.b16 %v553, %v552
    %v564 = vpack.c.b16 %v555, %v554
    %v565 = vpack.c.b16 %v557, %v556
    %574 = vmatprep.subr.bf16.mxu0 0
    %575 = vmatpush1.bf16.msra.mxu0 %v565
    %576 = vmatprep.subr.bf16.mxu0 0
    %577 = vmatpush1.bf16.msra.mxu0 %v564
    %578 = vmatprep.subr.bf16.mxu0 0
    %579 = vmatpush1.bf16.msra.mxu0 %v563
    %580 = vmatprep.subr.bf16.mxu0 0
    %581 = vmatpush1.bf16.msra.mxu0 %v562
    %582 = vmatprep.subr.bf16.mxu0 0
    %583 = vmatpush1.bf16.msra.mxu0 %v561
    %584 = vmatprep.subr.bf16.mxu0 0
    %585 = vmatpush1.bf16.msra.mxu0 %v560
    %586 = vmatprep.subr.bf16.mxu0 0
    %587 = vmatpush1.bf16.msra.mxu0 %v559
    %588 = vmatprep.subr.bf16.mxu0 0
    %589 = vmatpush1.bf16.msra.mxu0 %v558
    %590 = vmatprep.subr.bf16.mxu0 0
    %591 = vmatpush2.bf16.msra.mxu0 0
    %592 = vmatprep.subr.bf16.mxu0 0
    %593 = vmatpush2.bf16.msra.mxu0 0
    %594 = vmatprep.subr.bf16.mxu0 0
    %595 = vmatpush2.bf16.msra.mxu0 0
    %596 = vmatprep.subr.bf16.mxu0 0
    %597 = vmatpush2.bf16.msra.mxu0 0
    %598 = vmatprep.subr.bf16.mxu0 0
    %599 = vmatpush2.bf16.msra.mxu0 0
    %600 = vmatprep.subr.bf16.mxu0 0
    %601 = vmatpush2.bf16.msra.mxu0 0
    %602 = vmatprep.subr.bf16.mxu0 0
    %603 = vmatpush2.bf16.msra.mxu0 0
    %604 = vmatprep.subr.bf16.mxu0 0
    %605 = vmatpush2.bf16.msra.mxu0 0
    %606 = vmatprep.mubr.bf16.mxu0 0
    %607 = vmatmul.mubr.bf16.gmra.mxu0 %v502
    %v608 = vpop.f32.mrf.mxu0
    %v609 = vadd.f32 %v524, %v608
    %v610 = vpop.f32.mrf.mxu0
    %v611 = vpop.f32.mrf.mxu0
    %v612 = vpop.f32.mrf.mxu0
    %613 = vdwg.mxu0
    %v614 = vmax.f32 %v609, 0.0
    %v615 = vpack.c.bf16 %v614, %v614
    %v616 = vld [vmem:[%s11] sm:$0xf]
    %v617 = vld [vmem:[%s11 + $0x4] sm:$0xf]
    %v618 = vld [vmem:[%s11 + $0x8] sm:$0xf]
    %v619 = vld [vmem:[%s11 + $0xc] sm:$0xf]
    %v620 = vld [vmem:[%s11 + $0x10] sm:$0xf]
    %v621 = vld [vmem:[%s11 + $0x14] sm:$0xf]
    %v622 = vld [vmem:[%s11 + $0x18] sm:$0xf]
    %v623 = vld [vmem:[%s11 + $0x1c] sm:$0xf]
    %v624 = vld [vmem:[%s11 + $0x20] sm:$0xf]
    %v625 = vld [vmem:[%s11 + $0x24] sm:$0xf]
    %v626 = vld [vmem:[%s11 + $0x28] sm:$0xf]
    %v627 = vld [vmem:[%s11 + $0x2c] sm:$0xf]
    %v628 = vld [vmem:[%s11 + $0x30] sm:$0xf]
    %v629 = vld [vmem:[%s11 + $0x34] sm:$0xf]
    %v630 = vld [vmem:[%s11 + $0x38] sm:$0xf]
    %v631 = vld [vmem:[%s11 + $0x3c] sm:$0xf]
    %v632 = vld [vmem:[%s12] sm:$0x1]
    %v634 = vlaneseq
    %v635 = vshrl.u32 %v634, 7
    %v636 = vsub.s32 0, %v635
    %v637 = vrot.slane %v632, %v636
    %v655 = vunpack.c.l.b16 %v616
    %v656 = vunpack.c.l.b16 %v617
    %v657 = vunpack.c.l.b16 %v618
    %v658 = vunpack.c.l.b16 %v619
    %v659 = vunpack.c.l.b16 %v620
    %v660 = vunpack.c.l.b16 %v621
    %v661 = vunpack.c.l.b16 %v622
    %v662 = vunpack.c.l.b16 %v623
    %v663 = vunpack.c.l.b16 %v624
    %v664 = vunpack.c.l.b16 %v625
    %v665 = vunpack.c.l.b16 %v626
    %v666 = vunpack.c.l.b16 %v627
    %v667 = vunpack.c.l.b16 %v628
    %v668 = vunpack.c.l.b16 %v629
    %v669 = vunpack.c.l.b16 %v630
    %v670 = vunpack.c.l.b16 %v631
    %v671 = vpack.c.b16 %v656, %v655
    %v672 = vpack.c.b16 %v658, %v657
    %v673 = vpack.c.b16 %v660, %v659
    %v674 = vpack.c.b16 %v662, %v661
    %v675 = vpack.c.b16 %v664, %v663
    %v676 = vpack.c.b16 %v666, %v665
    %v677 = vpack.c.b16 %v668, %v667
    %v678 = vpack.c.b16 %v670, %v669
    %687 = vmatprep.subr.bf16.mxu0 0
    %688 = vmatpush1.bf16.msra.mxu0 %v678
    %689 = vmatprep.subr.bf16.mxu0 0
    %690 = vmatpush1.bf16.msra.mxu0 %v677
    %691 = vmatprep.subr.bf16.mxu0 0
    %692 = vmatpush1.bf16.msra.mxu0 %v676
    %693 = vmatprep.subr.bf16.mxu0 0
    %694 = vmatpush1.bf16.msra.mxu0 %v675
    %695 = vmatprep.subr.bf16.mxu0 0
    %696 = vmatpush1.bf16.msra.mxu0 %v674
    %697 = vmatprep.subr.bf16.mxu0 0
    %698 = vmatpush1.bf16.msra.mxu0 %v673
    %699 = vmatprep.subr.bf16.mxu0 0
    %700 = vmatpush1.bf16.msra.mxu0 %v672
    %701 = vmatprep.subr.bf16.mxu0 0
    %702 = vmatpush1.bf16.msra.mxu0 %v671
    %703 = vmatprep.subr.bf16.mxu0 0
    %704 = vmatpush2.bf16.msra.mxu0 0
    %705 = vmatprep.subr.bf16.mxu0 0
    %706 = vmatpush2.bf16.msra.mxu0 0
    %707 = vmatprep.subr.bf16.mxu0 0
    %708 = vmatpush2.bf16.msra.mxu0 0
    %709 = vmatprep.subr.bf16.mxu0 0
    %710 = vmatpush2.bf16.msra.mxu0 0
    %711 = vmatprep.subr.bf16.mxu0 0
    %712 = vmatpush2.bf16.msra.mxu0 0
    %713 = vmatprep.subr.bf16.mxu0 0
    %714 = vmatpush2.bf16.msra.mxu0 0
    %715 = vmatprep.subr.bf16.mxu0 0
    %716 = vmatpush2.bf16.msra.mxu0 0
    %717 = vmatprep.subr.bf16.mxu0 0
    %718 = vmatpush2.bf16.msra.mxu0 0
    %719 = vmatprep.mubr.bf16.mxu0 0
    %720 = vmatmul.mubr.bf16.gmra.mxu0 %v615
    %v721 = vpop.f32.mrf.mxu0
    %v722 = vadd.f32 %v637, %v721
    %v723 = vpop.f32.mrf.mxu0
    %v724 = vpop.f32.mrf.mxu0
    %v725 = vpop.f32.mrf.mxu0
    %726 = vdwg.mxu0
    %vm727 = vcmask 31744
    %728 = vst.msk [vmem:[#allocation10] sm:$0xff] %vm727, %v722
    // Predicated region
    $region70: #{tpu_custom_call.1} parent=1 // pred_check
      _
    $region71: #{tpu_custom_call.1} parent=1 // pred_check_branch
      %730 = sbr.rel (0) target = $region73
    $region72: #{tpu_custom_call.1} parent=1 // pred_region
      %s732 = ssub.s32 128, 32
      %733 = vsyncadd [#allocation4], %s732
      %s734 = sshll.u32 [#allocation10], 4
      %s735 = int_to_ptr.vmem [resolvable:$true] %s734
      %740 = dma.vmem_to_hbm [thread:$0]  %s735, 32, %s13, [#allocation4], 32, 32, 2
    $region73: #{tpu_custom_call.1} parent=1 // pred_fallthru
      _
    // Predicated region
    $region74: #{tpu_custom_call.1} parent=1 // pred_check
      _
    $region75: #{tpu_custom_call.1} parent=1 // pred_check_branch
      %742 = sbr.rel (0) target = $region77
    $region76: #{tpu_custom_call.1} parent=1 // pred_region
      %743 = dma.done [#allocation4], 128
    $region77: #{tpu_custom_call.1} parent=1 // pred_fallthru
      _
    %744 = vsyncpa [#allocation3], 1
    %745 = vsyncpa [#allocation6], 1
    %746 = vsyncpa [#allocation9], 1
    %747 = vsyncpa [#allocation4], 1

</llo_original>
